<compile_context>
chip_gen: v5e
topology: v5e:2x2
jax: 0.10.0
libtpu: 0.0.40
codegen_flags: <defaults>
</compile_context>

<pallas_src>
import jax
import jax.numpy as jnp
from jax.experimental import pallas as pl
from jax.experimental.pallas import tpu as pltpu


DIM = 2        # input_dim
TIME_DIM = 1   # time_dim
HIDDEN = 64    # h
MAX_TILE_N = 256   # rows per grid step; two live [TILE_N,64] f32 activations fit vregs


def _swish(x):
    return x * jax.nn.sigmoid(x)


def mlp_kernel(x_ref, t_ref, w1x_ref, w1t_ref, b1_ref, w2_ref, b2_ref,
               w3_ref, b3_ref, w4_ref, b4_ref, o_ref):
    x = x_ref[...]          # [TILE_N, DIM]
    t = t_ref[...]          # [TILE_N, 1]

    # Layer 1: equivalent to concat([x, t], 1) @ w1 + b1, with w1 split into
    # the x-part (DIM x H, MXU matmul) and the t-part (1 x H, VPU broadcast-mul).
    a1 = (jnp.dot(x, w1x_ref[...], preferred_element_type=jnp.float32)
          + t * w1t_ref[...] + b1_ref[...])
    a1 = _swish(a1)

    # Layer 2 / 3: Linear(h -> h) + Swish
    a2 = _swish(jnp.dot(a1, w2_ref[...], preferred_element_type=jnp.float32)
                + b2_ref[...])
    a3 = _swish(jnp.dot(a2, w3_ref[...], preferred_element_type=jnp.float32)
                + b3_ref[...])

    # Layer 4: Linear(h -> dim), no activation
    out = jnp.dot(a3, w4_ref[...], preferred_element_type=jnp.float32) + b4_ref[...]
    o_ref[...] = out.astype(o_ref.dtype)


def mlp_pallas(x, t, params):
    """x: [N, DIM] f32, t: [N, 1] f32. Returns [N, DIM] f32."""
    n = x.shape[0]
    # Tile over rows; round up to a sublane multiple, cap at MAX_TILE_N.
    tile_n = min(MAX_TILE_N, max(8, ((n + 7) // 8) * 8))
    n_pad = ((n + tile_n - 1) // tile_n) * tile_n
    if n_pad != n:
        x = jnp.pad(x, ((0, n_pad - n), (0, 0)))
        t = jnp.pad(t, ((0, n_pad - n), (0, 0)))

    def row_map(i):
        return (i, 0)

    def const_map(i):
        return (0, 0)

    in_specs = [
        pl.BlockSpec((tile_n, DIM), row_map),          # x
        pl.BlockSpec((tile_n, TIME_DIM), row_map),     # t
        pl.BlockSpec((DIM, HIDDEN), const_map),        # w1x
        pl.BlockSpec((TIME_DIM, HIDDEN), const_map),   # w1t
        pl.BlockSpec((1, HIDDEN), const_map),          # b1
        pl.BlockSpec((HIDDEN, HIDDEN), const_map),     # w2
        pl.BlockSpec((1, HIDDEN), const_map),          # b2
        pl.BlockSpec((HIDDEN, HIDDEN), const_map),     # w3
        pl.BlockSpec((1, HIDDEN), const_map),          # b3
        pl.BlockSpec((HIDDEN, DIM), const_map),        # w4
        pl.BlockSpec((1, DIM), const_map),             # b4
    ]

    out = pl.pallas_call(
        mlp_kernel,
        out_shape=jax.ShapeDtypeStruct((n_pad, DIM), jnp.float32),
        grid=(n_pad // tile_n,),
        in_specs=in_specs,
        out_specs=pl.BlockSpec((tile_n, DIM), row_map),
        compiler_params=pltpu.CompilerParams(
            dimension_semantics=("parallel",)),
    )(x, t,
      params["w1x"], params["w1t"], params["b1"],
      params["w2"], params["b2"],
      params["w3"], params["b3"],
      params["w4"], params["b4"])
    return out[:n]


def init_params(key):
    """Deterministic init mimicking nn.Linear default uniform(-1/sqrt(fan_in), ...)."""
    def linear(key, fan_in, fan_out):
        kw, kb = jax.random.split(key)
        bound = 1.0 / jnp.sqrt(fan_in)
        w = jax.random.uniform(kw, (fan_in, fan_out), jnp.float32, -bound, bound)
        b = jax.random.uniform(kb, (1, fan_out), jnp.float32, -bound, bound)
        return w, b

    k1, k2, k3, k4 = jax.random.split(key, 4)
    w1, b1 = linear(k1, DIM + TIME_DIM, HIDDEN)
    w2, b2 = linear(k2, HIDDEN, HIDDEN)
    w3, b3 = linear(k3, HIDDEN, HIDDEN)
    w4, b4 = linear(k4, HIDDEN, DIM)
    return dict(w1=w1, w1x=w1[:DIM, :], w1t=w1[DIM:, :], b1=b1,
                w2=w2, b2=b2, w3=w3, b3=b3, w4=w4, b4=b4)


def mlp_forward(x_t, t, params):
    """Reproduces Mlp.forward semantics (reshape, t expand, MLP, reshape back)."""
    size = x_t.shape
    x_flat = x_t.reshape(-1, DIM)                                    # (N, dim)
    t_flat = t.reshape(-1, TIME_DIM).astype(jnp.float32).reshape(-1, 1)
    t_flat = jnp.broadcast_to(t_flat, (x_flat.shape[0], 1))          # expand(N, 1)
    out = mlp_pallas(x_flat, t_flat, params)                         # (N, dim)
    return out.reshape(size)


def mlp_reference(x_t, t, params):
    """Pure-JAX reference (uses the original concat + full w1)."""
    size = x_t.shape
    x_flat = x_t.reshape(-1, DIM)
    t_flat = jnp.broadcast_to(
        t.reshape(-1, TIME_DIM).astype(jnp.float32).reshape(-1, 1),
        (x_flat.shape[0], 1))
    h = jnp.concatenate([x_flat, t_flat], axis=1)
    a1 = _swish(h @ params["w1"] + params["b1"])
    a2 = _swish(a1 @ params["w2"] + params["b2"])
    a3 = _swish(a2 @ params["w3"] + params["b3"])
    out = a3 @ params["w4"] + params["b4"]
    return out.reshape(size)


if __name__ == "__main__":
    key = jax.random.PRNGKey(0)
    kp, kx, kt, kx2, kt2 = jax.random.split(key, 5)

    params = init_params(kp)

    # Small case matching the module spec: x_t (4, 2, 2) -> N=8 rows, t (8, 1).
    x_t = jax.random.normal(kx, (4, 2, DIM), jnp.float32)
    t = jax.random.uniform(kt, (8, 1), jnp.float32)
    out = jax.block_until_ready(mlp_forward(x_t, t, params))
    ref = mlp_reference(x_t, t, params)
    assert out.shape == x_t.shape
    assert jnp.allclose(out, ref, atol=1e-5, rtol=1e-5)

    # Larger case that exercises the multi-tile grid + padding path (N=600, t scalar-expanded).
    x_t2 = jax.random.normal(kx2, (600, DIM), jnp.float32)
    t2 = jax.random.uniform(kt2, (1, 1), jnp.float32)   # expand(N, 1) path
    out2 = jax.block_until_ready(mlp_forward(x_t2, t2, params))
    ref2 = mlp_reference(x_t2, t2, params)
    assert out2.shape == x_t2.shape
    assert jnp.allclose(out2, ref2, atol=1e-5, rtol=1e-5)

    print("KERNEL_OK")
</pallas_src>

<mosaic_0001>
module attributes {stable_mosaic.version = 11 : i64} {
  func.func @mlp_kernel(%arg0: i32, %arg1: memref<8x2xf32, #tpu.memory_space<vmem>>, %arg2: memref<8x1xf32, #tpu.memory_space<vmem>>, %arg3: memref<2x64xf32, #tpu.memory_space<vmem>>, %arg4: memref<1x64xf32, #tpu.memory_space<vmem>>, %arg5: memref<1x64xf32, #tpu.memory_space<vmem>>, %arg6: memref<64x64xf32, #tpu.memory_space<vmem>>, %arg7: memref<1x64xf32, #tpu.memory_space<vmem>>, %arg8: memref<64x64xf32, #tpu.memory_space<vmem>>, %arg9: memref<1x64xf32, #tpu.memory_space<vmem>>, %arg10: memref<64x2xf32, #tpu.memory_space<vmem>>, %arg11: memref<1x2xf32, #tpu.memory_space<vmem>>, %arg12: memref<8x2xf32, #tpu.memory_space<vmem>>) attributes {dimension_semantics = [#tpu.dimension_semantics<parallel>], iteration_bounds = array<i64: 1>, scalar_prefetch = 0 : i64, scratch_operands = 0 : i64, tpu.core_type = #tpu.core_type<tc>, window_params = [{transform_indices = @transform_0, window_bounds = array<i64: 8, 2>}, {transform_indices = @transform_1, window_bounds = array<i64: 8, 1>}, {pipeline_mode = #tpu.pipeline_mode<synchronous>, transform_indices = @transform_2, window_bounds = array<i64: 2, 64>}, {pipeline_mode = #tpu.pipeline_mode<synchronous>, transform_indices = @transform_3, window_bounds = array<i64: 1, 64>}, {pipeline_mode = #tpu.pipeline_mode<synchronous>, transform_indices = @transform_4, window_bounds = array<i64: 1, 64>}, {pipeline_mode = #tpu.pipeline_mode<synchronous>, transform_indices = @transform_5, window_bounds = array<i64: 64, 64>}, {pipeline_mode = #tpu.pipeline_mode<synchronous>, transform_indices = @transform_6, window_bounds = array<i64: 1, 64>}, {pipeline_mode = #tpu.pipeline_mode<synchronous>, transform_indices = @transform_7, window_bounds = array<i64: 64, 64>}, {pipeline_mode = #tpu.pipeline_mode<synchronous>, transform_indices = @transform_8, window_bounds = array<i64: 1, 64>}, {pipeline_mode = #tpu.pipeline_mode<synchronous>, transform_indices = @transform_9, window_bounds = array<i64: 64, 2>}, {pipeline_mode = #tpu.pipeline_mode<synchronous>, transform_indices = @transform_10, window_bounds = array<i64: 1, 2>}, {transform_indices = @transform_11, window_bounds = array<i64: 8, 2>}]} {
    %c0 = arith.constant 0 : index
    %c0_0 = arith.constant 0 : index
    %0 = vector.load %arg1[%c0, %c0_0] : memref<8x2xf32, #tpu.memory_space<vmem>>, vector<8x2xf32>
    %c0_1 = arith.constant 0 : index
    %c0_2 = arith.constant 0 : index
    %1 = vector.load %arg2[%c0_1, %c0_2] : memref<8x1xf32, #tpu.memory_space<vmem>>, vector<8x1xf32>
    %c0_3 = arith.constant 0 : index
    %c0_4 = arith.constant 0 : index
    %2 = vector.load %arg3[%c0_3, %c0_4] : memref<2x64xf32, #tpu.memory_space<vmem>>, vector<2x64xf32>
    %cst = arith.constant dense<0.000000e+00> : vector<8x64xf32>
    %3 = tpu.matmul %0, %2, %cst {dimension_numbers = #tpu.dot_dimension_numbers<[1], [0], [0], [1], [0, 0, 1, 1], [], []>} : vector<8x2xf32>, vector<2x64xf32>, vector<8x64xf32> -> vector<8x64xf32>
    %c0_5 = arith.constant 0 : index
    %c0_6 = arith.constant 0 : index
    %4 = vector.load %arg4[%c0_5, %c0_6] : memref<1x64xf32, #tpu.memory_space<vmem>>, vector<1x64xf32>
    %5 = vector.broadcast %1 : vector<8x1xf32> to vector<8x64xf32>
    %6 = vector.broadcast %4 : vector<1x64xf32> to vector<8x64xf32>
    %7 = arith.mulf %5, %6 : vector<8x64xf32>
    %8 = arith.addf %3, %7 : vector<8x64xf32>
    %c0_7 = arith.constant 0 : index
    %c0_8 = arith.constant 0 : index
    %9 = vector.load %arg5[%c0_7, %c0_8] : memref<1x64xf32, #tpu.memory_space<vmem>>, vector<1x64xf32>
    %10 = vector.broadcast %9 : vector<1x64xf32> to vector<8x64xf32>
    %11 = arith.addf %8, %10 : vector<8x64xf32>
    %12 = arith.negf %11 : vector<8x64xf32>
    %13 = math.exp %12 : vector<8x64xf32>
    %cst_9 = arith.constant 1.000000e+00 : f32
    %14 = vector.broadcast %cst_9 : f32 to vector<8x64xf32>
    %15 = arith.addf %14, %13 : vector<8x64xf32>
    %16 = arith.divf %14, %15 : vector<8x64xf32>
    %17 = arith.mulf %11, %16 : vector<8x64xf32>
    %c0_10 = arith.constant 0 : index
    %c0_11 = arith.constant 0 : index
    %18 = vector.load %arg6[%c0_10, %c0_11] : memref<64x64xf32, #tpu.memory_space<vmem>>, vector<64x64xf32>
    %cst_12 = arith.constant dense<0.000000e+00> : vector<8x64xf32>
    %19 = tpu.matmul %17, %18, %cst_12 {dimension_numbers = #tpu.dot_dimension_numbers<[1], [0], [0], [1], [0, 0, 1, 1], [], []>} : vector<8x64xf32>, vector<64x64xf32>, vector<8x64xf32> -> vector<8x64xf32>
    %c0_13 = arith.constant 0 : index
    %c0_14 = arith.constant 0 : index
    %20 = vector.load %arg7[%c0_13, %c0_14] : memref<1x64xf32, #tpu.memory_space<vmem>>, vector<1x64xf32>
    %21 = vector.broadcast %20 : vector<1x64xf32> to vector<8x64xf32>
    %22 = arith.addf %19, %21 : vector<8x64xf32>
    %23 = arith.negf %22 : vector<8x64xf32>
    %24 = math.exp %23 : vector<8x64xf32>
    %cst_15 = arith.constant 1.000000e+00 : f32
    %25 = vector.broadcast %cst_15 : f32 to vector<8x64xf32>
    %26 = arith.addf %25, %24 : vector<8x64xf32>
    %27 = arith.divf %25, %26 : vector<8x64xf32>
    %28 = arith.mulf %22, %27 : vector<8x64xf32>
    %c0_16 = arith.constant 0 : index
    %c0_17 = arith.constant 0 : index
    %29 = vector.load %arg8[%c0_16, %c0_17] : memref<64x64xf32, #tpu.memory_space<vmem>>, vector<64x64xf32>
    %cst_18 = arith.constant dense<0.000000e+00> : vector<8x64xf32>
    %30 = tpu.matmul %28, %29, %cst_18 {dimension_numbers = #tpu.dot_dimension_numbers<[1], [0], [0], [1], [0, 0, 1, 1], [], []>} : vector<8x64xf32>, vector<64x64xf32>, vector<8x64xf32> -> vector<8x64xf32>
    %c0_19 = arith.constant 0 : index
    %c0_20 = arith.constant 0 : index
    %31 = vector.load %arg9[%c0_19, %c0_20] : memref<1x64xf32, #tpu.memory_space<vmem>>, vector<1x64xf32>
    %32 = vector.broadcast %31 : vector<1x64xf32> to vector<8x64xf32>
    %33 = arith.addf %30, %32 : vector<8x64xf32>
    %34 = arith.negf %33 : vector<8x64xf32>
    %35 = math.exp %34 : vector<8x64xf32>
    %cst_21 = arith.constant 1.000000e+00 : f32
    %36 = vector.broadcast %cst_21 : f32 to vector<8x64xf32>
    %37 = arith.addf %36, %35 : vector<8x64xf32>
    %38 = arith.divf %36, %37 : vector<8x64xf32>
    %39 = arith.mulf %33, %38 : vector<8x64xf32>
    %c0_22 = arith.constant 0 : index
    %c0_23 = arith.constant 0 : index
    %40 = vector.load %arg10[%c0_22, %c0_23] : memref<64x2xf32, #tpu.memory_space<vmem>>, vector<64x2xf32>
    %cst_24 = arith.constant dense<0.000000e+00> : vector<8x2xf32>
    %41 = tpu.matmul %39, %40, %cst_24 {dimension_numbers = #tpu.dot_dimension_numbers<[1], [0], [0], [1], [0, 0, 1, 1], [], []>} : vector<8x64xf32>, vector<64x2xf32>, vector<8x2xf32> -> vector<8x2xf32>
    %c0_25 = arith.constant 0 : index
    %c0_26 = arith.constant 0 : index
    %42 = vector.load %arg11[%c0_25, %c0_26] : memref<1x2xf32, #tpu.memory_space<vmem>>, vector<1x2xf32>
    %43 = vector.broadcast %42 : vector<1x2xf32> to vector<8x2xf32>
    %44 = arith.addf %41, %43 : vector<8x2xf32>
    %c0_27 = arith.constant 0 : index
    %c0_28 = arith.constant 0 : index
    %45 = vector.load %arg12[%c0_27, %c0_28] : memref<8x2xf32, #tpu.memory_space<vmem>>, vector<8x2xf32>
    tpu.vector_store %arg12[%c0_27, %c0_28], %44 {strides = array<i32>} : memref<8x2xf32, #tpu.memory_space<vmem>>, vector<8x2xf32>,
    return
  }
  func.func @transform_0(%arg0: i32) -> (i32, i32) {
    %c0_i32 = arith.constant 0 : i32
    %c0_i32_0 = arith.constant 0 : i32
    return %arg0, %c0_i32 : i32, i32
  }
  func.func @transform_1(%arg0: i32) -> (i32, i32) {
    %c0_i32 = arith.constant 0 : i32
    %c0_i32_0 = arith.constant 0 : i32
    return %arg0, %c0_i32 : i32, i32
  }
  func.func @transform_2(%arg0: i32) -> (i32, i32) {
    %c0_i32 = arith.constant 0 : i32
    %c0_i32_0 = arith.constant 0 : i32
    %c0_i32_1 = arith.constant 0 : i32
    return %c0_i32, %c0_i32_0 : i32, i32
  }
  func.func @transform_3(%arg0: i32) -> (i32, i32) {
    %c0_i32 = arith.constant 0 : i32
    %c0_i32_0 = arith.constant 0 : i32
    %c0_i32_1 = arith.constant 0 : i32
    return %c0_i32, %c0_i32_0 : i32, i32
  }
  func.func @transform_4(%arg0: i32) -> (i32, i32) {
    %c0_i32 = arith.constant 0 : i32
    %c0_i32_0 = arith.constant 0 : i32
    %c0_i32_1 = arith.constant 0 : i32
    return %c0_i32, %c0_i32_0 : i32, i32
  }
  func.func @transform_5(%arg0: i32) -> (i32, i32) {
    %c0_i32 = arith.constant 0 : i32
    %c0_i32_0 = arith.constant 0 : i32
    %c0_i32_1 = arith.constant 0 : i32
    return %c0_i32, %c0_i32_0 : i32, i32
  }
  func.func @transform_6(%arg0: i32) -> (i32, i32) {
    %c0_i32 = arith.constant 0 : i32
    %c0_i32_0 = arith.constant 0 : i32
    %c0_i32_1 = arith.constant 0 : i32
    return %c0_i32, %c0_i32_0 : i32, i32
  }
  func.func @transform_7(%arg0: i32) -> (i32, i32) {
    %c0_i32 = arith.constant 0 : i32
    %c0_i32_0 = arith.constant 0 : i32
    %c0_i32_1 = arith.constant 0 : i32
    return %c0_i32, %c0_i32_0 : i32, i32
  }
  func.func @transform_8(%arg0: i32) -> (i32, i32) {
    %c0_i32 = arith.constant 0 : i32
    %c0_i32_0 = arith.constant 0 : i32
    %c0_i32_1 = arith.constant 0 : i32
    return %c0_i32, %c0_i32_0 : i32, i32
  }
  func.func @transform_9(%arg0: i32) -> (i32, i32) {
    %c0_i32 = arith.constant 0 : i32
    %c0_i32_0 = arith.constant 0 : i32
    %c0_i32_1 = arith.constant 0 : i32
    return %c0_i32, %c0_i32_0 : i32, i32
  }
  func.func @transform_10(%arg0: i32) -> (i32, i32) {
    %c0_i32 = arith.constant 0 : i32
    %c0_i32_0 = arith.constant 0 : i32
    %c0_i32_1 = arith.constant 0 : i32
    return %c0_i32, %c0_i32_0 : i32, i32
  }
  func.func @transform_11(%arg0: i32) -> (i32, i32) {
    %c0_i32 = arith.constant 0 : i32
    %c0_i32_0 = arith.constant 0 : i32
    return %arg0, %c0_i32 : i32, i32
  }
}

</mosaic_0001>

<llo_original>
// kernel: tpu_custom_call.1
$region0: #{tpu_custom_call.1}
  #allocation0 [shape = 'u32[]', space=smem, size = 0x4, offset = 0x4, fixed_abs, tag = 'smem constant byte address 0x4 - core index']
  #allocation1 [shape = 'u32[72,128]{1,0:T(1,128)}', space=vmem, size = 0x9000, scoped, tag = 'internal scratch']
  %s0 = inlined_call_operand.vmem [shape: f32[8,2], index: 0, kind: input, shape index: {}]
  %s1 = inlined_call_operand.vmem [shape: f32[8,1], index: 1, kind: input, shape index: {}]
  %s2 = inlined_call_operand.vmem [shape: f32[2,64], index: 2, kind: input, shape index: {}]
  %s3 = inlined_call_operand.vmem [shape: f32[1,64], index: 3, kind: input, shape index: {}]
  %s4 = inlined_call_operand.vmem [shape: f32[1,64], index: 4, kind: input, shape index: {}]
  %s5 = inlined_call_operand.vmem [shape: f32[64,64], index: 5, kind: input, shape index: {}]
  %s6 = inlined_call_operand.vmem [shape: f32[1,64], index: 6, kind: input, shape index: {}]
  %s7 = inlined_call_operand.hbm [shape: f32[64,64], index: 7, kind: input, shape index: {}]
  %s8 = inlined_call_operand.vmem [shape: f32[1,64], index: 8, kind: input, shape index: {}]
  %s9 = inlined_call_operand.vmem [shape: f32[64,2], index: 9, kind: input, shape index: {}]
  %s10 = inlined_call_operand.vmem [shape: f32[1,2], index: 10, kind: input, shape index: {}]
  %s11 = inlined_call_operand.vmem [shape: f32[8,2], index: 11, kind: output, shape index: {}]
  %s12 = sld [smem:[#allocation0]]
  $region58: #{tpu_custom_call.1} parent=0
    _
  %s14 = ssub.s32 1, %s12
  %s15 = scalar_select 0, %s14, %s12
  $region1: #{tpu_custom_call.1} parent=0
    #allocation2 [shape = 'u8[32768]{0}', space=vmem, size = 0x8000, scoped, tag = 'input window, operand 7, single buffered']
    #allocation3 [shape = 's32[1]{0}', space=sflag, size = 0x4, scoped, tag = 'scoped memory for tpu_custom_call.1']
    %16 = vsyncpa [#allocation3], 0
    // Predicated region
    $region2: #{tpu_custom_call.1} parent=1 // pred_check
      _
    $region3: #{tpu_custom_call.1} parent=1 // pred_check_branch
      %18 = sbr.rel (0) target = $region5
    $region4: #{tpu_custom_call.1} parent=1 // pred_region
      _
    $region5: #{tpu_custom_call.1} parent=1 // pred_fallthru
      _
    // Predicated region
    $region6: #{tpu_custom_call.1} parent=1 // pred_check
      _
    $region7: #{tpu_custom_call.1} parent=1 // pred_check_branch
      %20 = sbr.rel (0) target = $region9
    $region8: #{tpu_custom_call.1} parent=1 // pred_region
      _
    $region9: #{tpu_custom_call.1} parent=1 // pred_fallthru
      _
    // Predicated region
    $region10: #{tpu_custom_call.1} parent=1 // pred_check
      _
    $region11: #{tpu_custom_call.1} parent=1 // pred_check_branch
      %22 = sbr.rel (0) target = $region13
    $region12: #{tpu_custom_call.1} parent=1 // pred_region
      _
    $region13: #{tpu_custom_call.1} parent=1 // pred_fallthru
      _
    // Predicated region
    $region14: #{tpu_custom_call.1} parent=1 // pred_check
      _
    $region15: #{tpu_custom_call.1} parent=1 // pred_check_branch
      %24 = sbr.rel (0) target = $region17
    $region16: #{tpu_custom_call.1} parent=1 // pred_region
      _
    $region17: #{tpu_custom_call.1} parent=1 // pred_fallthru
      _
    // Predicated region
    $region18: #{tpu_custom_call.1} parent=1 // pred_check
      _
    $region19: #{tpu_custom_call.1} parent=1 // pred_check_branch
      %26 = sbr.rel (0) target = $region21
    $region20: #{tpu_custom_call.1} parent=1 // pred_region
      _
    $region21: #{tpu_custom_call.1} parent=1 // pred_fallthru
      _
    // Predicated region
    $region22: #{tpu_custom_call.1} parent=1 // pred_check
      _
    $region23: #{tpu_custom_call.1} parent=1 // pred_check_branch
      %28 = sbr.rel (0) target = $region25
    $region24: #{tpu_custom_call.1} parent=1 // pred_region
      _
    $region25: #{tpu_custom_call.1} parent=1 // pred_fallthru
      _
    // Predicated region
    $region26: #{tpu_custom_call.1} parent=1 // pred_check
      _
    $region27: #{tpu_custom_call.1} parent=1 // pred_check_branch
      %30 = sbr.rel (0) target = $region29
    $region28: #{tpu_custom_call.1} parent=1 // pred_region
      _
    $region29: #{tpu_custom_call.1} parent=1 // pred_fallthru
      _
    // Predicated region
    $region30: #{tpu_custom_call.1} parent=1 // pred_check
      _
    $region31: #{tpu_custom_call.1} parent=1 // pred_check_branch
      %32 = sbr.rel (0) target = $region33
    $region32: #{tpu_custom_call.1} parent=1 // pred_region
      %34 = vsyncadd [#allocation3], 0
      %s35 = sshll.u32 %s7, 4
      %s36 = int_to_ptr.hbm [resolvable:$true] %s35
      %s37 = sshll.u32 [#allocation2], 4
      %s38 = int_to_ptr.vmem [resolvable:$true] %s37
      %43 = dma.hbm_to_vmem [thread:$0]  %s36, 1024, %s38, [#allocation3], 128, 128, 8
    $region33: #{tpu_custom_call.1} parent=1 // pred_fallthru
      _
    // Predicated region
    $region34: #{tpu_custom_call.1} parent=1 // pred_check
      _
    $region35: #{tpu_custom_call.1} parent=1 // pred_check_branch
      %45 = sbr.rel (0) target = $region37
    $region36: #{tpu_custom_call.1} parent=1 // pred_region
      _
    $region37: #{tpu_custom_call.1} parent=1 // pred_fallthru
      _
    // Predicated region
    $region38: #{tpu_custom_call.1} parent=1 // pred_check
      _
    $region39: #{tpu_custom_call.1} parent=1 // pred_check_branch
      %47 = sbr.rel (0) target = $region41
    $region40: #{tpu_custom_call.1} parent=1 // pred_region
      _
    $region41: #{tpu_custom_call.1} parent=1 // pred_fallthru
      _
    // Predicated region
    $region42: #{tpu_custom_call.1} parent=1 // pred_check
      _
    $region43: #{tpu_custom_call.1} parent=1 // pred_check_branch
      %49 = sbr.rel (0) target = $region45
    $region44: #{tpu_custom_call.1} parent=1 // pred_region
      _
    $region45: #{tpu_custom_call.1} parent=1 // pred_fallthru
      _
    // Predicated region
    $region46: #{tpu_custom_call.1} parent=1 // pred_check
      _
    $region47: #{tpu_custom_call.1} parent=1 // pred_check_branch
      %51 = sbr.rel (0) target = $region49
    $region48: #{tpu_custom_call.1} parent=1 // pred_region
      %53 = dma.done [#allocation3], 1024
    $region49: #{tpu_custom_call.1} parent=1 // pred_fallthru
      _
    %v54 = vld [vmem:[%s0] sm:$0xff]
    %v55 = vld [vmem:[%s1] sm:$0xff]
    %v56 = vld [vmem:[%s2] sm:$0x3]
    %v57 = vld [vmem:[%s3] sm:$0x1]
    %59 = vset.pattern.permute.xlu0 0
    %60 = vperm.xlu0 %59, %v55
    %v61 = vpop.permute.xlu0 %60
    %v64 = vperm.slane %v57, 0
    %v66 = vmul.f32 %v61, %v64
    %vm67 = vcmask 15360
    %v69 = vsel %vm67, %v54, 0
    %vm71 = vcmask 1041408
    %v73 = vsel %vm71, %v56, 0
    %75 = vmatpush.msra.mxu0 0.0
    %76 = vmatpush.msra.mxu0 0.0
    %77 = vmatpush.msra.mxu0 0.0
    %78 = vmatpush.msra.mxu0 0.0
    %79 = vmatpush.msra.mxu0 0.0
    %80 = vmatpush.msra.mxu0 0.0
    %81 = vmatpush.msra.mxu0 0.0
    %82 = vmatpush.msra.mxu0 0.0
    %83 = vmatpush.msra.mxu0 0.0
    %84 = vmatpush.msra.mxu0 0.0
    %85 = vmatpush.msra.mxu0 0.0
    %86 = vmatpush.msra.mxu0 0.0
    %87 = vmatpush.msra.mxu0 0.0
    %88 = vmatpush.msra.mxu0 0.0
    %89 = vmatpush.msra.mxu0 0.0
    %90 = vmatpush.msra.mxu0 %v73
    %91 = vmatmul.f32.gmra.mxu0 %v69
    %v92 = vpop.f32.mrf.mxu0
    %v93 = vadd.f32 %v66, %v92
    %94 = vdwg.mxu0
    %v95 = vld [vmem:[%s4] sm:$0x1]
    %v97 = vperm.slane %v95, 0
    %v99 = vadd.f32 %v93, %v97
    %v100 = vxor.u32 %v99, 2147483648
    %v101 = vmul.f32 %v100, 1.442695
    %v102 = vpow.pop %v101
    %v103 = vadd.f32 %v102, 1.0
    %v104 = vrcp.pop %v103
    %v105 = vmul.f32 %v103, %v104
    %v106 = vsub.f32 1.0, %v105
    %v107 = vmul.f32 %v104, %v106
    %v108 = vadd.f32 %v104, %v107
    %vm109 = vweird.f32 %v103
    %vm110 = vweird.f32 %v104
    %vm111 = vmor %vm109, %vm110
    %v112 = vsel %vm111, %v104, %v108
    %v113 = vand.u32 2147483647, %v103
    %vm114 = vcmp.eq.f32.partialorder %v113, 8.507059e+37
    %v115 = vand.u32 %v103, 2147483648
    %v116 = vor.u32 1.1754944e-38, %v115
    %v117 = vsel %vm114, %v116, %v112
    %v118 = vmul.f32 1.0, %v117
    %v119 = vmul.f32 %v99, %v118
    %v120 = vld [vmem:[%s5] sm:$0xff]
    %v121 = vld [vmem:[%s5 + $0x8] sm:$0xff]
    %v122 = vld [vmem:[%s5 + $0x10] sm:$0xff]
    %v123 = vld [vmem:[%s5 + $0x18] sm:$0xff]
    %v124 = vld [vmem:[%s5 + $0x20] sm:$0xff]
    %v125 = vld [vmem:[%s5 + $0x28] sm:$0xff]
    %v126 = vld [vmem:[%s5 + $0x30] sm:$0xff]
    %v127 = vld [vmem:[%s5 + $0x38] sm:$0xff]
    %v128 = vld [vmem:[%s6] sm:$0x1]
    %v130 = vperm.slane %v128, 0
    %vm132 = vcmask 523264
    %v134 = vsel %vm132, %v119, 0
    %136 = vmatpush.msra.mxu0 0.0
    %137 = vmatpush.msra.mxu0 0.0
    %138 = vmatpush.msra.mxu0 0.0
    %139 = vmatpush.msra.mxu0 0.0
    %140 = vmatpush.msra.mxu0 0.0
    %141 = vmatpush.msra.mxu0 0.0
    %142 = vmatpush.msra.mxu0 0.0
    %143 = vmatpush.msra.mxu0 0.0
    %144 = vmatpush.msra.mxu0 %v127
    %145 = vmatpush.msra.mxu0 %v126
    %146 = vmatpush.msra.mxu0 %v125
    %147 = vmatpush.msra.mxu0 %v124
    %148 = vmatpush.msra.mxu0 %v123
    %149 = vmatpush.msra.mxu0 %v122
    %150 = vmatpush.msra.mxu0 %v121
    %151 = vmatpush.msra.mxu0 %v120
    %152 = vmatmul.f32.gmra.mxu0 %v134
    %v153 = vpop.f32.mrf.mxu0
    %v154 = vadd.f32 %v130, %v153
    %155 = vdwg.mxu0
    %v156 = vxor.u32 %v154, 2147483648
    %v157 = vmul.f32 %v156, 1.442695
    %v158 = vpow.pop %v157
    %v159 = vadd.f32 %v158, 1.0
    %v160 = vrcp.pop %v159
    %v161 = vmul.f32 %v159, %v160
    %v162 = vsub.f32 1.0, %v161
    %v163 = vmul.f32 %v160, %v162
    %v164 = vadd.f32 %v160, %v163
    %vm165 = vweird.f32 %v159
    %vm166 = vweird.f32 %v160
    %vm167 = vmor %vm165, %vm166
    %v168 = vsel %vm167, %v160, %v164
    %v169 = vand.u32 2147483647, %v159
    %vm170 = vcmp.eq.f32.partialorder %v169, 8.507059e+37
    %v171 = vand.u32 %v159, 2147483648
    %v172 = vor.u32 1.1754944e-38, %v171
    %v173 = vsel %vm170, %v172, %v168
    %v174 = vmul.f32 1.0, %v173
    %v175 = vmul.f32 %v154, %v174
    %v176 = vld [vmem:[#allocation2] sm:$0xff]
    %v177 = vld [vmem:[#allocation2 + $0x8] sm:$0xff]
    %v178 = vld [vmem:[#allocation2 + $0x10] sm:$0xff]
    %v179 = vld [vmem:[#allocation2 + $0x18] sm:$0xff]
    %v180 = vld [vmem:[#allocation2 + $0x20] sm:$0xff]
    %v181 = vld [vmem:[#allocation2 + $0x28] sm:$0xff]
    %v182 = vld [vmem:[#allocation2 + $0x30] sm:$0xff]
    %v183 = vld [vmem:[#allocation2 + $0x38] sm:$0xff]
    %v184 = vld [vmem:[%s8] sm:$0x1]
    %v186 = vperm.slane %v184, 0
    %v189 = vsel %vm132, %v175, 0
    %191 = vmatpush.msra.mxu0 0.0
    %192 = vmatpush.msra.mxu0 0.0
    %193 = vmatpush.msra.mxu0 0.0
    %194 = vmatpush.msra.mxu0 0.0
    %195 = vmatpush.msra.mxu0 0.0
    %196 = vmatpush.msra.mxu0 0.0
    %197 = vmatpush.msra.mxu0 0.0
    %198 = vmatpush.msra.mxu0 0.0
    %199 = vmatpush.msra.mxu0 %v183
    %200 = vmatpush.msra.mxu0 %v182
    %201 = vmatpush.msra.mxu0 %v181
    %202 = vmatpush.msra.mxu0 %v180
    %203 = vmatpush.msra.mxu0 %v179
    %204 = vmatpush.msra.mxu0 %v178
    %205 = vmatpush.msra.mxu0 %v177
    %206 = vmatpush.msra.mxu0 %v176
    %207 = vmatmul.f32.gmra.mxu0 %v189
    %v208 = vpop.f32.mrf.mxu0
    %v209 = vadd.f32 %v186, %v208
    %210 = vdwg.mxu0
    %v211 = vxor.u32 %v209, 2147483648
    %v212 = vmul.f32 %v211, 1.442695
    %v213 = vpow.pop %v212
    %v214 = vadd.f32 %v213, 1.0
    %v215 = vrcp.pop %v214
    %v216 = vmul.f32 %v214, %v215
    %v217 = vsub.f32 1.0, %v216
    %v218 = vmul.f32 %v215, %v217
    %v219 = vadd.f32 %v215, %v218
    %vm220 = vweird.f32 %v214
    %vm221 = vweird.f32 %v215
    %vm222 = vmor %vm220, %vm221
    %v223 = vsel %vm222, %v215, %v219
    %v224 = vand.u32 2147483647, %v214
    %vm225 = vcmp.eq.f32.partialorder %v224, 8.507059e+37
    %v226 = vand.u32 %v214, 2147483648
    %v227 = vor.u32 1.1754944e-38, %v226
    %v228 = vsel %vm225, %v227, %v223
    %v229 = vmul.f32 1.0, %v228
    %v230 = vmul.f32 %v209, %v229
    %v231 = vld [vmem:[%s9] sm:$0xff]
    %v232 = vld [vmem:[%s9 + $0x8] sm:$0xff]
    %v233 = vld [vmem:[%s9 + $0x10] sm:$0xff]
    %v234 = vld [vmem:[%s9 + $0x18] sm:$0xff]
    %v235 = vld [vmem:[%s9 + $0x20] sm:$0xff]
    %v236 = vld [vmem:[%s9 + $0x28] sm:$0xff]
    %v237 = vld [vmem:[%s9 + $0x30] sm:$0xff]
    %v238 = vld [vmem:[%s9 + $0x38] sm:$0xff]
    %v239 = vld [vmem:[%s10] sm:$0x1]
    %v241 = vperm.slane %v239, 0
    %v244 = vsel %vm132, %v230, 0
    %246 = vmatpush.msra.mxu0 0.0
    %247 = vmatpush.msra.mxu0 0.0
    %248 = vmatpush.msra.mxu0 0.0
    %249 = vmatpush.msra.mxu0 0.0
    %250 = vmatpush.msra.mxu0 0.0
    %251 = vmatpush.msra.mxu0 0.0
    %252 = vmatpush.msra.mxu0 0.0
    %253 = vmatpush.msra.mxu0 0.0
    %254 = vmatpush.msra.mxu0 %v238
    %255 = vmatpush.msra.mxu0 %v237
    %256 = vmatpush.msra.mxu0 %v236
    %257 = vmatpush.msra.mxu0 %v235
    %258 = vmatpush.msra.mxu0 %v234
    %259 = vmatpush.msra.mxu0 %v233
    %260 = vmatpush.msra.mxu0 %v232
    %261 = vmatpush.msra.mxu0 %v231
    %262 = vmatmul.f32.gmra.mxu0 %v244
    %v263 = vpop.f32.mrf.mxu0
    %v264 = vadd.f32 %v241, %v263
    %265 = vdwg.mxu0
    %266 = vst.msk [vmem:[%s11] sm:$0xff] %vm67, %v264
    // Predicated region
    $region50: #{tpu_custom_call.1} parent=1 // pred_check
      _
    $region51: #{tpu_custom_call.1} parent=1 // pred_check_branch
      %268 = sbr.rel (0) target = $region53
    $region52: #{tpu_custom_call.1} parent=1 // pred_region
      _
    $region53: #{tpu_custom_call.1} parent=1 // pred_fallthru
      _
    // Predicated region
    $region54: #{tpu_custom_call.1} parent=1 // pred_check
      _
    $region55: #{tpu_custom_call.1} parent=1 // pred_check_branch
      %270 = sbr.rel (0) target = $region57
    $region56: #{tpu_custom_call.1} parent=1 // pred_region
      _
    $region57: #{tpu_custom_call.1} parent=1 // pred_fallthru
      _
    %271 = vsyncpa [#allocation3], 1

</llo_original>
